<compile_context>
chip_gen: v7x
topology: tpu7x:2x2x1
jax: 0.10.0
libtpu: 0.0.40
codegen_flags: <defaults>
</compile_context>

<pallas_src>
import functools
import numpy as np
import jax
import jax.numpy as jnp
from jax import lax
from jax.experimental import pallas as pl
from jax.experimental.pallas import tpu as pltpu


def _round_up(x, m):
    return ((x + m - 1) // m) * m


def _make_sum_kernel(offsets, S_pad, TB):
    """offsets[k][j] = symbols[k][j] - min(symbols[k])  (static python ints)."""
    K = len(offsets)

    def kernel(*refs):
        out_ref = refs[-1]
        p_refs = refs[:K]

        # Value-space scatter of distribution 0: poly[b, s] = P(X_0 - min_0 == s)
        col = lax.broadcasted_iota(jnp.int32, (TB, S_pad), 1)
        p0 = p_refs[0][...]                                   # [TB, n_0]
        n_acc0 = min(4, len(offsets[0]))
        accs = [jnp.zeros((TB, S_pad), jnp.float32) for _ in range(n_acc0)]
        for j, d in enumerate(offsets[0]):
            accs[j % n_acc0] = accs[j % n_acc0] + (
                (col == d).astype(jnp.float32) * p0[:, j:j + 1])
        poly = functools.reduce(lambda a, b: a + b, accs)

        # Convolution with each remaining distribution:
        #   poly[b, s] <- sum_j poly[b, s - d_j] * p_k[b, j]
        # implemented as lane rotation (XLU) + FMA (VPU).  Wrapped-in lanes are
        # guaranteed zero (see file header), so no mask is needed.
        for k in range(1, K):
            pk = p_refs[k][...]                               # [TB, n_k]
            n_acc = min(4, len(offsets[k]))
            accs = [jnp.zeros((TB, S_pad), jnp.float32) for _ in range(n_acc)]
            for j, d in enumerate(offsets[k]):
                shifted = poly if d == 0 else pltpu.roll(poly, shift=d, axis=1)
                accs[j % n_acc] = accs[j % n_acc] + shifted * pk[:, j:j + 1]
            poly = functools.reduce(lambda a, b: a + b, accs)

        out_ref[...] = poly

    return kernel


@functools.lru_cache(maxsize=None)
def _build_sum_call(offsets, B_pad, S_pad, TB):
    K = len(offsets)
    ns = [len(o) for o in offsets]
    kernel = _make_sum_kernel(offsets, S_pad, TB)
    grid = (B_pad // TB,)

    # Inputs stay unpadded in the lane dim: block last dim == full array dim.
    in_specs = [pl.BlockSpec((TB, n), lambda i: (i, 0)) for n in ns]
    out_specs = pl.BlockSpec((TB, S_pad), lambda i: (i, 0))

    # Explicit VMEM budget: double-buffered I/O blocks (inputs lane-pad to 128
    # in VMEM layout) plus in-kernel intermediates; clamped to 32 MiB so it is
    # safe on every generation incl. v7x's 64 MiB physical VMEM.
    est = 2 * TB * S_pad * 4
    est += 2 * sum(TB * max(n, 128) * 4 for n in ns)
    est += 8 * TB * S_pad * 4
    vmem_limit = int(min(32 << 20, max(4 << 20, 2 * est)))

    call = pl.pallas_call(
        kernel,
        out_shape=jax.ShapeDtypeStruct((B_pad, S_pad), jnp.float32),
        grid=grid,
        in_specs=in_specs,
        out_specs=out_specs,
        compiler_params=pltpu.CompilerParams(
            dimension_semantics=("parallel",),
            vmem_limit_bytes=vmem_limit),
    )
    return jax.jit(call)


def _choose_tb(b_pad8):
    """Batch tile: large (up to 256 rows, multiple of 8) but leaving >= 2 grid
    blocks whenever the batch allows, so both v7x TensorCores get work."""
    half = _round_up((b_pad8 + 1) // 2, 8)
    return max(8, min(256, half))


def sum_forward(probs, symbols):
    """Pallas implementation of Sum()(*distrs) with the default (additive)
    summation_fn over integer symbols.

    probs:   list of K arrays, probs[k] shape [B, n_k], float32
    symbols: list of K integer 1-D numpy arrays
    Returns: (out_probs [B, S], out_symbols = [base, ..., base+S-1])
    """
    K = len(probs)
    B = int(probs[0].shape[0])
    syms = [np.asarray(s) for s in symbols]
    assert all(np.issubdtype(s.dtype, np.integer) for s in syms), \
        "sum_forward supports integer symbols (default summation_fn)"

    mins = [int(s.min()) for s in syms]
    maxs = [int(s.max()) for s in syms]
    base = sum(mins)
    S = sum(mx - mn for mx, mn in zip(maxs, mins)) + 1
    S_pad = max(128, _round_up(S, 128))                 # lane-dense output
    # Roll-without-mask invariant used by the kernel: total support fits S_pad.
    assert S <= S_pad
    offsets = tuple(tuple(int(v - mn) for v in s) for s, mn in zip(syms, mins))

    b_pad8 = _round_up(max(B, 8), 8)
    TB = _choose_tb(b_pad8)
    B_pad = _round_up(b_pad8, TB)

    padded = []
    for k in range(K):
        p = jnp.asarray(probs[k], jnp.float32)
        p = jnp.pad(p, ((0, B_pad - B), (0, 0)))        # batch-pad only
        padded.append(p)

    call = _build_sum_call(offsets, B_pad, S_pad, TB)
    out = call(*padded)

    out_probs = out[:B, :S]
    out_symbols = list(range(base, base + S))
    return out_probs, out_symbols


def sum_reference(probs, symbols):
    """Literal collate-then-map reference (numpy), on the dense sum support."""
    K = len(probs)
    B = probs[0].shape[0]
    cross_p = probs[0]
    cross_s = [(s,) for s in symbols[0]]
    for k in range(1, K):
        cross_p = (cross_p[:, :, None] * probs[k][:, None, :]).reshape(B, -1)
        cross_s = [t + (s,) for t in cross_s for s in symbols[k]]
    sums = [int(sum(t)) for t in cross_s]
    base = min(sums)
    S = max(sums) - base + 1
    out = np.zeros((B, S), np.float32)
    for j, s in enumerate(sums):
        out[:, s - base] += cross_p[:, j]
    return out, list(range(base, base + S))


if __name__ == "__main__":
    key = jax.random.PRNGKey(0)
    B, K = 32, 3                      # B=32 -> TB=16, grid=(2,): exercises tiling
    ns = [4, 3, 5]

    keys = jax.random.split(key, K)
    probs, symbols = [], []
    for k in range(K):
        logits = jax.random.normal(keys[k], (B, ns[k]), dtype=jnp.float32)
        probs.append(jax.nn.softmax(logits, axis=-1))         # [B, n_k]
        symbols.append(np.arange(1 + k, 1 + k + ns[k]))        # integer symbols

    out, out_syms = sum_forward(probs, symbols)
    out = jax.block_until_ready(out)

    ref, ref_syms = sum_reference([np.asarray(p) for p in probs], symbols)
    assert out_syms == ref_syms, "support mismatch"
    assert out.shape == (B, len(ref_syms))
    assert np.allclose(np.asarray(out), ref, atol=1e-5), "Pallas Sum mismatch"
    print("KERNEL_OK")
</pallas_src>

<mosaic_0001>
module attributes {stable_mosaic.version = 11 : i64} {
  func.func @kernel(%arg0: i32, %arg1: memref<16x4xf32, #tpu.memory_space<vmem>>, %arg2: memref<16x3xf32, #tpu.memory_space<vmem>>, %arg3: memref<16x5xf32, #tpu.memory_space<vmem>>, %arg4: memref<16x128xf32, #tpu.memory_space<vmem>>) attributes {dimension_semantics = [#tpu.dimension_semantics<parallel>], iteration_bounds = array<i64: 2>, scalar_prefetch = 0 : i64, scratch_operands = 0 : i64, tpu.core_type = #tpu.core_type<tc>, window_params = [{transform_indices = @transform_0, window_bounds = array<i64: 16, 4>}, {transform_indices = @transform_1, window_bounds = array<i64: 16, 3>}, {transform_indices = @transform_2, window_bounds = array<i64: 16, 5>}, {transform_indices = @transform_3, window_bounds = array<i64: 16, 128>}]} {
    %0 = tpu.iota {dimensions = array<i32: 1>} : vector<16x128xi32>
    %c0 = arith.constant 0 : index
    %c0_0 = arith.constant 0 : index
    %1 = vector.load %arg1[%c0, %c0_0] : memref<16x4xf32, #tpu.memory_space<vmem>>, vector<16x4xf32>
    %cst = arith.constant 0.000000e+00 : f32
    %2 = vector.broadcast %cst : f32 to vector<16x128xf32>
    %cst_1 = arith.constant 0.000000e+00 : f32
    %3 = vector.broadcast %cst_1 : f32 to vector<16x128xf32>
    %cst_2 = arith.constant 0.000000e+00 : f32
    %4 = vector.broadcast %cst_2 : f32 to vector<16x128xf32>
    %cst_3 = arith.constant 0.000000e+00 : f32
    %5 = vector.broadcast %cst_3 : f32 to vector<16x128xf32>
    %c0_i32 = arith.constant 0 : i32
    %6 = vector.broadcast %c0_i32 : i32 to vector<16x128xi32>
    %7 = arith.cmpi eq, %0, %6 : vector<16x128xi32>
    %8 = arith.extui %7 : vector<16x128xi1> to vector<16x128xi32>
    %9 = arith.sitofp %8 : vector<16x128xi32> to vector<16x128xf32>
    %10 = vector.extract_strided_slice %1 {offsets = [0, 0], sizes = [16, 1], strides = [1, 1]} : vector<16x4xf32> to vector<16x1xf32>
    %11 = vector.broadcast %10 : vector<16x1xf32> to vector<16x128xf32>
    %12 = arith.mulf %9, %11 : vector<16x128xf32>
    %13 = arith.addf %2, %12 : vector<16x128xf32>
    %c1_i32 = arith.constant 1 : i32
    %14 = vector.broadcast %c1_i32 : i32 to vector<16x128xi32>
    %15 = arith.cmpi eq, %0, %14 : vector<16x128xi32>
    %16 = arith.extui %15 : vector<16x128xi1> to vector<16x128xi32>
    %17 = arith.sitofp %16 : vector<16x128xi32> to vector<16x128xf32>
    %18 = vector.extract_strided_slice %1 {offsets = [0, 1], sizes = [16, 1], strides = [1, 1]} : vector<16x4xf32> to vector<16x1xf32>
    %19 = vector.broadcast %18 : vector<16x1xf32> to vector<16x128xf32>
    %20 = arith.mulf %17, %19 : vector<16x128xf32>
    %21 = arith.addf %3, %20 : vector<16x128xf32>
    %c2_i32 = arith.constant 2 : i32
    %22 = vector.broadcast %c2_i32 : i32 to vector<16x128xi32>
    %23 = arith.cmpi eq, %0, %22 : vector<16x128xi32>
    %24 = arith.extui %23 : vector<16x128xi1> to vector<16x128xi32>
    %25 = arith.sitofp %24 : vector<16x128xi32> to vector<16x128xf32>
    %26 = vector.extract_strided_slice %1 {offsets = [0, 2], sizes = [16, 1], strides = [1, 1]} : vector<16x4xf32> to vector<16x1xf32>
    %27 = vector.broadcast %26 : vector<16x1xf32> to vector<16x128xf32>
    %28 = arith.mulf %25, %27 : vector<16x128xf32>
    %29 = arith.addf %4, %28 : vector<16x128xf32>
    %c3_i32 = arith.constant 3 : i32
    %30 = vector.broadcast %c3_i32 : i32 to vector<16x128xi32>
    %31 = arith.cmpi eq, %0, %30 : vector<16x128xi32>
    %32 = arith.extui %31 : vector<16x128xi1> to vector<16x128xi32>
    %33 = arith.sitofp %32 : vector<16x128xi32> to vector<16x128xf32>
    %34 = vector.extract_strided_slice %1 {offsets = [0, 3], sizes = [16, 1], strides = [1, 1]} : vector<16x4xf32> to vector<16x1xf32>
    %35 = vector.broadcast %34 : vector<16x1xf32> to vector<16x128xf32>
    %36 = arith.mulf %33, %35 : vector<16x128xf32>
    %37 = arith.addf %5, %36 : vector<16x128xf32>
    %38 = arith.addf %13, %21 : vector<16x128xf32>
    %39 = arith.addf %38, %29 : vector<16x128xf32>
    %40 = arith.addf %39, %37 : vector<16x128xf32>
    %c0_4 = arith.constant 0 : index
    %c0_5 = arith.constant 0 : index
    %41 = vector.load %arg2[%c0_4, %c0_5] : memref<16x3xf32, #tpu.memory_space<vmem>>, vector<16x3xf32>
    %cst_6 = arith.constant 0.000000e+00 : f32
    %42 = vector.broadcast %cst_6 : f32 to vector<16x128xf32>
    %cst_7 = arith.constant 0.000000e+00 : f32
    %43 = vector.broadcast %cst_7 : f32 to vector<16x128xf32>
    %cst_8 = arith.constant 0.000000e+00 : f32
    %44 = vector.broadcast %cst_8 : f32 to vector<16x128xf32>
    %45 = vector.extract_strided_slice %41 {offsets = [0, 0], sizes = [16, 1], strides = [1, 1]} : vector<16x3xf32> to vector<16x1xf32>
    %46 = vector.broadcast %45 : vector<16x1xf32> to vector<16x128xf32>
    %47 = arith.mulf %40, %46 : vector<16x128xf32>
    %48 = arith.addf %42, %47 : vector<16x128xf32>
    %c1_i32_9 = arith.constant 1 : i32
    %49 = tpu.dynamic_rotate %40 by %c1_i32_9 dim 1 : vector<16x128xf32>, i32 -> vector<16x128xf32>
    %50 = vector.extract_strided_slice %41 {offsets = [0, 1], sizes = [16, 1], strides = [1, 1]} : vector<16x3xf32> to vector<16x1xf32>
    %51 = vector.broadcast %50 : vector<16x1xf32> to vector<16x128xf32>
    %52 = arith.mulf %49, %51 : vector<16x128xf32>
    %53 = arith.addf %43, %52 : vector<16x128xf32>
    %c2_i32_10 = arith.constant 2 : i32
    %54 = tpu.dynamic_rotate %40 by %c2_i32_10 dim 1 : vector<16x128xf32>, i32 -> vector<16x128xf32>
    %55 = vector.extract_strided_slice %41 {offsets = [0, 2], sizes = [16, 1], strides = [1, 1]} : vector<16x3xf32> to vector<16x1xf32>
    %56 = vector.broadcast %55 : vector<16x1xf32> to vector<16x128xf32>
    %57 = arith.mulf %54, %56 : vector<16x128xf32>
    %58 = arith.addf %44, %57 : vector<16x128xf32>
    %59 = arith.addf %48, %53 : vector<16x128xf32>
    %60 = arith.addf %59, %58 : vector<16x128xf32>
    %c0_11 = arith.constant 0 : index
    %c0_12 = arith.constant 0 : index
    %61 = vector.load %arg3[%c0_11, %c0_12] : memref<16x5xf32, #tpu.memory_space<vmem>>, vector<16x5xf32>
    %cst_13 = arith.constant 0.000000e+00 : f32
    %62 = vector.broadcast %cst_13 : f32 to vector<16x128xf32>
    %cst_14 = arith.constant 0.000000e+00 : f32
    %63 = vector.broadcast %cst_14 : f32 to vector<16x128xf32>
    %cst_15 = arith.constant 0.000000e+00 : f32
    %64 = vector.broadcast %cst_15 : f32 to vector<16x128xf32>
    %cst_16 = arith.constant 0.000000e+00 : f32
    %65 = vector.broadcast %cst_16 : f32 to vector<16x128xf32>
    %66 = vector.extract_strided_slice %61 {offsets = [0, 0], sizes = [16, 1], strides = [1, 1]} : vector<16x5xf32> to vector<16x1xf32>
    %67 = vector.broadcast %66 : vector<16x1xf32> to vector<16x128xf32>
    %68 = arith.mulf %60, %67 : vector<16x128xf32>
    %69 = arith.addf %62, %68 : vector<16x128xf32>
    %c1_i32_17 = arith.constant 1 : i32
    %70 = tpu.dynamic_rotate %60 by %c1_i32_17 dim 1 : vector<16x128xf32>, i32 -> vector<16x128xf32>
    %71 = vector.extract_strided_slice %61 {offsets = [0, 1], sizes = [16, 1], strides = [1, 1]} : vector<16x5xf32> to vector<16x1xf32>
    %72 = vector.broadcast %71 : vector<16x1xf32> to vector<16x128xf32>
    %73 = arith.mulf %70, %72 : vector<16x128xf32>
    %74 = arith.addf %63, %73 : vector<16x128xf32>
    %c2_i32_18 = arith.constant 2 : i32
    %75 = tpu.dynamic_rotate %60 by %c2_i32_18 dim 1 : vector<16x128xf32>, i32 -> vector<16x128xf32>
    %76 = vector.extract_strided_slice %61 {offsets = [0, 2], sizes = [16, 1], strides = [1, 1]} : vector<16x5xf32> to vector<16x1xf32>
    %77 = vector.broadcast %76 : vector<16x1xf32> to vector<16x128xf32>
    %78 = arith.mulf %75, %77 : vector<16x128xf32>
    %79 = arith.addf %64, %78 : vector<16x128xf32>
    %c3_i32_19 = arith.constant 3 : i32
    %80 = tpu.dynamic_rotate %60 by %c3_i32_19 dim 1 : vector<16x128xf32>, i32 -> vector<16x128xf32>
    %81 = vector.extract_strided_slice %61 {offsets = [0, 3], sizes = [16, 1], strides = [1, 1]} : vector<16x5xf32> to vector<16x1xf32>
    %82 = vector.broadcast %81 : vector<16x1xf32> to vector<16x128xf32>
    %83 = arith.mulf %80, %82 : vector<16x128xf32>
    %84 = arith.addf %65, %83 : vector<16x128xf32>
    %c4_i32 = arith.constant 4 : i32
    %85 = tpu.dynamic_rotate %60 by %c4_i32 dim 1 : vector<16x128xf32>, i32 -> vector<16x128xf32>
    %86 = vector.extract_strided_slice %61 {offsets = [0, 4], sizes = [16, 1], strides = [1, 1]} : vector<16x5xf32> to vector<16x1xf32>
    %87 = vector.broadcast %86 : vector<16x1xf32> to vector<16x128xf32>
    %88 = arith.mulf %85, %87 : vector<16x128xf32>
    %89 = arith.addf %69, %88 : vector<16x128xf32>
    %90 = arith.addf %89, %74 : vector<16x128xf32>
    %91 = arith.addf %90, %79 : vector<16x128xf32>
    %92 = arith.addf %91, %84 : vector<16x128xf32>
    %c0_20 = arith.constant 0 : index
    %c0_21 = arith.constant 0 : index
    %93 = vector.load %arg4[%c0_20, %c0_21] : memref<16x128xf32, #tpu.memory_space<vmem>>, vector<16x128xf32>
    tpu.vector_store %arg4[%c0_20, %c0_21], %92 {strides = array<i32>} : memref<16x128xf32, #tpu.memory_space<vmem>>, vector<16x128xf32>,
    return
  }
  func.func @transform_0(%arg0: i32) -> (i32, i32) {
    %c0_i32 = arith.constant 0 : i32
    %c0_i32_0 = arith.constant 0 : i32
    return %arg0, %c0_i32 : i32, i32
  }
  func.func @transform_1(%arg0: i32) -> (i32, i32) {
    %c0_i32 = arith.constant 0 : i32
    %c0_i32_0 = arith.constant 0 : i32
    return %arg0, %c0_i32 : i32, i32
  }
  func.func @transform_2(%arg0: i32) -> (i32, i32) {
    %c0_i32 = arith.constant 0 : i32
    %c0_i32_0 = arith.constant 0 : i32
    return %arg0, %c0_i32 : i32, i32
  }
  func.func @transform_3(%arg0: i32) -> (i32, i32) {
    %c0_i32 = arith.constant 0 : i32
    %c0_i32_0 = arith.constant 0 : i32
    return %arg0, %c0_i32 : i32, i32
  }
}

</mosaic_0001>

<llo_original>
// kernel: tpu_custom_call.1
$region0: #{tpu_custom_call.1}
  #allocation0 [shape = 'u32[]', space=smem, size = 0x4, offset = 0x4, fixed_abs, tag = 'smem constant byte address 0x4 - core index']
  #allocation1 [shape = 'u32[144,128]{1,0:T(1,128)}', space=vmem, size = 0x12000, scoped, tag = 'internal scratch']
  %s0 = inlined_call_operand.vmem [shape: f32[32,4], index: 0, kind: input, shape index: {}]
  %s1 = inlined_call_operand.vmem [shape: f32[32,3], index: 1, kind: input, shape index: {}]
  %s2 = inlined_call_operand.vmem [shape: f32[32,5], index: 2, kind: input, shape index: {}]
  %s3 = inlined_call_operand.hbm [shape: f32[32,128], index: 3, kind: output, shape index: {}]
  %s4 = sld [smem:[#allocation0]]
  $region45: #{tpu_custom_call.1} parent=0
    _
  %s6 = ssub.s32 1, %s4
  %s7 = scalar_select 0, %s6, %s4
  $region1: #{tpu_custom_call.1} parent=0
    #allocation2 [shape = 'u8[16384]{0}', space=vmem, size = 0x4000, scoped, tag = 'output window, operand 0']
    #allocation3 [shape = 's32[2]{0}', space=sflag, size = 0x8, scoped, tag = 'scoped memory for tpu_custom_call.1']
    %8 = vsyncpa [#allocation3], 0
    %s9 = scalar_lea.sflag [#allocation3], 1
    %10 = vsyncpa %s9, 0
    loop: start=0, step=1, limit=4
    $region2: #{tpu_custom_call.1} parent=1 // loop_pre_header
      _
    $region3: #{tpu_custom_call.1} parent=1 // loop_header
      %s12 = sphi 0, %s16
      %p13 = scmp.ge.s32.totalorder %s12, 4
      %s22 = sphi 0, %s24
      %s25 = sphi 0, %s22
      %s26 = sphi 0, %s25
      %s42 = sphi 0, %s26
      %s48 = sphi 0, %s50
      %s51 = sphi 0, %s48
      %s52 = sphi 0, %s51
      %s68 = sphi 0, %s52
      %s74 = sphi 0, %s76
      %s77 = sphi 0, %s74
      %s78 = sphi 0, %s77
      %s94 = sphi 0, %s78
      %s100 = sphi 0, %s102
      %s103 = sphi 0, %s100
      %s104 = sphi 0, %s103
      %s120 = sphi 0, %s104
    $region4: #{tpu_custom_call.1} parent=1 // loop_header_branch
      %15 = sbr.rel (%p13) target = $region8
    $region5: #{tpu_custom_call.1} parent=1 // loop_body
      %s17 = ssub.s32 %s12, 1
      %s18 = ssub.s32 %s12, 2
      %s19 = sadd.s32 %s12, 1
      %s20 = ssub.s32 %s12, %s19
      %p21 = scmp.eq.s32.totalorder %s20, 0
      %s23 = sadd.s32 %s22, 1
      %s24 = scalar_select %p21, %s22, %s23
      %p27 = pneg %p21
      %p28 = scmp.eq.s32.totalorder %s12, 1
      %p29 = por %p27, %p28
      %p30 = scmp.ne.s32.totalorder %s22, %s25
      %p31 = scmp.eq.s32.totalorder %s12, 0
      %p32 = por %p30, %p31
      %p33 = scmp.ne.s32.totalorder %s22, %s25
      %p34 = scmp.eq.s32.totalorder %s17, 1
      %p35 = por %p33, %p34
      %p36 = scmp.ne.s32.totalorder %s25, %s26
      %p37 = scmp.eq.s32.totalorder %s17, 0
      %p38 = por %p36, %p37
      %p39 = scmp.ne.s32.totalorder %s25, %s26
      %p40 = scmp.eq.s32.totalorder %s18, 1
      %p41 = por %p39, %p40
      %p43 = scmp.ne.s32.totalorder %s26, %s42
      %p44 = scmp.eq.s32.totalorder %s18, 0
      %p45 = por %p43, %p44
      %s46 = ssub.s32 %s12, %s19
      %p47 = scmp.eq.s32.totalorder %s46, 0
      %s49 = sadd.s32 %s48, 1
      %s50 = scalar_select %p47, %s48, %s49
      %p53 = pneg %p47
      %p54 = scmp.eq.s32.totalorder %s12, 1
      %p55 = por %p53, %p54
      %p56 = scmp.ne.s32.totalorder %s48, %s51
      %p57 = scmp.eq.s32.totalorder %s12, 0
      %p58 = por %p56, %p57
      %p59 = scmp.ne.s32.totalorder %s48, %s51
      %p60 = scmp.eq.s32.totalorder %s17, 1
      %p61 = por %p59, %p60
      %p62 = scmp.ne.s32.totalorder %s51, %s52
      %p63 = scmp.eq.s32.totalorder %s17, 0
      %p64 = por %p62, %p63
      %p65 = scmp.ne.s32.totalorder %s51, %s52
      %p66 = scmp.eq.s32.totalorder %s18, 1
      %p67 = por %p65, %p66
      %p69 = scmp.ne.s32.totalorder %s52, %s68
      %p70 = scmp.eq.s32.totalorder %s18, 0
      %p71 = por %p69, %p70
      %s72 = ssub.s32 %s12, %s19
      %p73 = scmp.eq.s32.totalorder %s72, 0
      %s75 = sadd.s32 %s74, 1
      %s76 = scalar_select %p73, %s74, %s75
      %p79 = pneg %p73
      %p80 = scmp.eq.s32.totalorder %s12, 1
      %p81 = por %p79, %p80
      %p82 = scmp.ne.s32.totalorder %s74, %s77
      %p83 = scmp.eq.s32.totalorder %s12, 0
      %p84 = por %p82, %p83
      %p85 = scmp.ne.s32.totalorder %s74, %s77
      %p86 = scmp.eq.s32.totalorder %s17, 1
      %p87 = por %p85, %p86
      %p88 = scmp.ne.s32.totalorder %s77, %s78
      %p89 = scmp.eq.s32.totalorder %s17, 0
      %p90 = por %p88, %p89
      %p91 = scmp.ne.s32.totalorder %s77, %s78
      %p92 = scmp.eq.s32.totalorder %s18, 1
      %p93 = por %p91, %p92
      %p95 = scmp.ne.s32.totalorder %s78, %s94
      %p96 = scmp.eq.s32.totalorder %s18, 0
      %p97 = por %p95, %p96
      %s98 = ssub.s32 %s12, %s19
      %p99 = scmp.eq.s32.totalorder %s98, 0
      %s101 = sadd.s32 %s100, 1
      %s102 = scalar_select %p99, %s100, %s101
      %p105 = pneg %p99
      %p106 = scmp.eq.s32.totalorder %s12, 1
      %p107 = por %p105, %p106
      %p108 = scmp.ne.s32.totalorder %s100, %s103
      %p109 = scmp.eq.s32.totalorder %s12, 0
      %p110 = por %p108, %p109
      %p111 = scmp.ne.s32.totalorder %s100, %s103
      %p112 = scmp.eq.s32.totalorder %s17, 1
      %p113 = por %p111, %p112
      %p114 = scmp.ne.s32.totalorder %s103, %s104
      %p115 = scmp.eq.s32.totalorder %s17, 0
      %p116 = por %p114, %p115
      %p117 = scmp.ne.s32.totalorder %s103, %s104
      %p118 = scmp.eq.s32.totalorder %s18, 1
      %p119 = por %p117, %p118
      %p121 = scmp.ne.s32.totalorder %s104, %s120
      %p122 = scmp.eq.s32.totalorder %s18, 0
      %p123 = por %p121, %p122
      %p124 = scmp.le.s32.totalorder 1, %s12
      %p125 = scmp.lt.s32.totalorder %s12, 3
      %p126 = pnand %p124, %p125
      %p127 = pneg %p126
      // Predicated region
      $region9: #{tpu_custom_call.1} parent=5 // pred_check
        _
      $region10: #{tpu_custom_call.1} parent=5 // pred_check_branch
        %129 = sbr.rel (%p126) target = $region12
      $region11: #{tpu_custom_call.1} parent=5 // pred_region
        %s130 = ssub.s32 %s12, 1
      $region12: #{tpu_custom_call.1} parent=5 // pred_fallthru
        _
      %p131 = scmp.lt.s32.totalorder %s12, 2
      // Predicated region
      $region13: #{tpu_custom_call.1} parent=5 // pred_check
        %p132 = pneg %p131
      $region14: #{tpu_custom_call.1} parent=5 // pred_check_branch
        %134 = sbr.rel (%p132) target = $region16
      $region15: #{tpu_custom_call.1} parent=5 // pred_region
        // Predicated region
        $region17: #{tpu_custom_call.1} parent=15 // pred_check
          %p135 = pneg %p32
        $region18: #{tpu_custom_call.1} parent=15 // pred_check_branch
          %137 = sbr.rel (%p135) target = $region20
        $region19: #{tpu_custom_call.1} parent=15 // pred_region
          %s138 = smul.u32 2, %s12
          %p139 = scmp.lt.s32.totalorder %s138, 3
          %s140 = scalar_select %p139, %s138, 3
          %s141 = smul.addr %s140, 8
          %s142 = scalar_lea.vmem %s0, %s141
          %s143 = smul.u32 2, %s12
        $region20: #{tpu_custom_call.1} parent=15 // pred_fallthru
          _
        // Predicated region
        $region21: #{tpu_custom_call.1} parent=15 // pred_check
          %p144 = pneg %p58
        $region22: #{tpu_custom_call.1} parent=15 // pred_check_branch
          %146 = sbr.rel (%p144) target = $region24
        $region23: #{tpu_custom_call.1} parent=15 // pred_region
          %s147 = smul.u32 2, %s12
          %p148 = scmp.lt.s32.totalorder %s147, 3
          %s149 = scalar_select %p148, %s147, 3
          %s150 = smul.addr %s149, 8
          %s151 = scalar_lea.vmem %s1, %s150
          %s152 = smul.u32 2, %s12
        $region24: #{tpu_custom_call.1} parent=15 // pred_fallthru
          _
        // Predicated region
        $region25: #{tpu_custom_call.1} parent=15 // pred_check
          %p153 = pneg %p84
        $region26: #{tpu_custom_call.1} parent=15 // pred_check_branch
          %155 = sbr.rel (%p153) target = $region28
        $region27: #{tpu_custom_call.1} parent=15 // pred_region
          %s156 = smul.u32 2, %s12
          %p157 = scmp.lt.s32.totalorder %s156, 3
          %s158 = scalar_select %p157, %s156, 3
          %s159 = smul.addr %s158, 8
          %s160 = scalar_lea.vmem %s2, %s159
          %s161 = smul.u32 2, %s12
        $region28: #{tpu_custom_call.1} parent=15 // pred_fallthru
          _
      $region16: #{tpu_custom_call.1} parent=5 // pred_fallthru
        _
      %p162 = scmp.le.s32.totalorder 1, %s12
      %p163 = scmp.lt.s32.totalorder %s12, 3
      %p164 = pnand %p162, %p163
      %p165 = pneg %p164
      // Predicated region
      $region29: #{tpu_custom_call.1} parent=5 // pred_check
        _
      $region30: #{tpu_custom_call.1} parent=5 // pred_check_branch
        %167 = sbr.rel (%p164) target = $region32
      $region31: #{tpu_custom_call.1} parent=5 // pred_region
        %s168 = ssub.s32 %s12, 1
        %s169 = smul.u32 2, %s17
        %p170 = scmp.lt.s32.totalorder %s169, 3
        %s171 = scalar_select %p170, %s169, 3
        %s172 = smul.addr %s171, 8
        %s173 = scalar_lea.vmem %s0, %s172
        %p174 = pneg %p38
        %p175 = pneg %p35
        %s176 = smul.u32 2, %s17
        %p177 = scmp.lt.s32.totalorder %s176, 3
        %s178 = scalar_select %p177, %s176, 3
        %s179 = smul.addr %s178, 8
        %s180 = scalar_lea.vmem %s1, %s179
        %p181 = pneg %p64
        %p182 = pneg %p61
        %s183 = smul.u32 2, %s17
        %p184 = scmp.lt.s32.totalorder %s183, 3
        %s185 = scalar_select %p184, %s183, 3
        %s186 = smul.addr %s185, 8
        %s187 = scalar_lea.vmem %s2, %s186
        %p188 = pneg %p90
        %p189 = pneg %p87
        %p190 = pneg %p116
        %p191 = pneg %p113
        %s192 = sand.u32 %s103, 1
        %s193 = scalar_lea.sflag [#allocation3], %s192
        %s194 = sand.u32 %s103, 1
        %s195 = smul.addr %s194, 16
        %s196 = scalar_lea.vmem [#allocation2], %s195
        %s197 = smul.u32 2, %s17
        %p198 = scmp.lt.s32.totalorder %s197, 3
        %s199 = scalar_select %p198, %s197, 3
        %s200 = smul.addr %s199, 8
        %s201 = scalar_lea.vmem %s0, %s200
        %s202 = smul.u32 2, %s17
        %s203 = smul.u32 2, %s17
        %p204 = scmp.lt.s32.totalorder %s203, 3
        %s205 = scalar_select %p204, %s203, 3
        %s206 = smul.addr %s205, 8
        %s207 = scalar_lea.vmem %s1, %s206
        %s208 = smul.u32 2, %s17
        %s209 = smul.u32 2, %s17
        %p210 = scmp.lt.s32.totalorder %s209, 3
        %s211 = scalar_select %p210, %s209, 3
        %s212 = smul.addr %s211, 8
        %s213 = scalar_lea.vmem %s2, %s212
        %s214 = smul.u32 2, %s17
        %s215 = smul.u32 2, %s17
        %v216 = vlaneseq
        %v217 = vand.u32 %v216, 127
        %v218 = vld [vmem:[%s201] sm:$0xff]
        %v219 = vld [vmem:[%s201 + $0x8] sm:$0xff]
        %vm220 = vcmp.eq.s32.totalorder %v217, 0
        %v221 = vsel %vm220, 1, 0
        %v222 = vcvt.s32.f32 %v221
        %224 = vset.pattern.permute.xlu0 0
        %225 = vperm.xlu0 %224, %v218
        %v226 = vpop.permute.xlu0 %225
        %229 = vset.pattern.permute.xlu0 0
        %230 = vperm.xlu0 %229, %v219
        %v231 = vpop.permute.xlu0 %230
        %v233 = vmul.f32 %v222, %v226
        %v234 = vmul.f32 %v222, %v231
        %v235 = vadd.f32 %v233, 0.0
        %v236 = vadd.f32 %v234, 0.0
        %vm237 = vcmp.eq.s32.totalorder %v217, 1
        %v238 = vsel %vm237, 1, 0
        %v239 = vcvt.s32.f32 %v238
        %240 = vset.pattern.permute.xlu0 1
        %241 = vperm.xlu0 %240, %v218
        %v242 = vpop.permute.xlu0 %241
        %244 = vset.pattern.permute.xlu0 1
        %245 = vperm.xlu0 %244, %v219
        %v246 = vpop.permute.xlu0 %245
        %v248 = vmul.f32 %v239, %v242
        %v249 = vmul.f32 %v239, %v246
        %v250 = vadd.f32 %v248, 0.0
        %v251 = vadd.f32 %v249, 0.0
        %vm252 = vcmp.eq.s32.totalorder %v217, 2
        %v253 = vsel %vm252, 1, 0
        %v254 = vcvt.s32.f32 %v253
        %255 = vset.pattern.permute.xlu0 2
        %256 = vperm.xlu0 %255, %v218
        %v257 = vpop.permute.xlu0 %256
        %259 = vset.pattern.permute.xlu0 2
        %260 = vperm.xlu0 %259, %v219
        %v261 = vpop.permute.xlu0 %260
        %v263 = vmul.f32 %v254, %v257
        %v264 = vmul.f32 %v254, %v261
        %v265 = vadd.f32 %v263, 0.0
        %v266 = vadd.f32 %v264, 0.0
        %vm267 = vcmp.eq.s32.totalorder %v217, 3
        %v268 = vsel %vm267, 1, 0
        %v269 = vcvt.s32.f32 %v268
        %270 = vset.pattern.permute.xlu0 3
        %271 = vperm.xlu0 %270, %v218
        %v272 = vpop.permute.xlu0 %271
        %274 = vset.pattern.permute.xlu0 3
        %275 = vperm.xlu0 %274, %v219
        %v276 = vpop.permute.xlu0 %275
        %v278 = vmul.f32 %v269, %v272
        %v279 = vmul.f32 %v269, %v276
        %v280 = vadd.f32 %v278, 0.0
        %v281 = vadd.f32 %v279, 0.0
        %v282 = vadd.f32 %v235, %v250
        %v283 = vadd.f32 %v236, %v251
        %v284 = vadd.f32 %v282, %v265
        %v285 = vadd.f32 %v283, %v266
        %v286 = vadd.f32 %v284, %v280
        %v287 = vadd.f32 %v285, %v281
        %v288 = vld [vmem:[%s207] sm:$0xff]
        %v289 = vld [vmem:[%s207 + $0x8] sm:$0xff]
        %291 = vset.pattern.permute.xlu0 0
        %292 = vperm.xlu0 %291, %v288
        %v293 = vpop.permute.xlu0 %292
        %296 = vset.pattern.permute.xlu0 0
        %297 = vperm.xlu0 %296, %v289
        %v298 = vpop.permute.xlu0 %297
        %v300 = vmul.f32 %v286, %v293
        %v301 = vmul.f32 %v287, %v298
        %v302 = vadd.f32 %v300, 0.0
        %v303 = vadd.f32 %v301, 0.0
        %304 = vrot.lane.b32.xlu0 %v286, 1
        %v305 = vpop.permute.xlu0 %304
        %306 = vrot.lane.b32.xlu0 %v287, 1
        %v307 = vpop.permute.xlu0 %306
        %308 = vset.pattern.permute.xlu0 1
        %309 = vperm.xlu0 %308, %v288
        %v310 = vpop.permute.xlu0 %309
        %312 = vset.pattern.permute.xlu0 1
        %313 = vperm.xlu0 %312, %v289
        %v314 = vpop.permute.xlu0 %313
        %v316 = vmul.f32 %v305, %v310
        %v317 = vmul.f32 %v307, %v314
        %v318 = vadd.f32 %v316, 0.0
        %v319 = vadd.f32 %v317, 0.0
        %320 = vrot.lane.b32.xlu0 %v286, 2
        %v321 = vpop.permute.xlu0 %320
        %322 = vrot.lane.b32.xlu0 %v287, 2
        %v323 = vpop.permute.xlu0 %322
        %324 = vset.pattern.permute.xlu0 2
        %325 = vperm.xlu0 %324, %v288
        %v326 = vpop.permute.xlu0 %325
        %328 = vset.pattern.permute.xlu0 2
        %329 = vperm.xlu0 %328, %v289
        %v330 = vpop.permute.xlu0 %329
        %v332 = vmul.f32 %v321, %v326
        %v333 = vmul.f32 %v323, %v330
        %v334 = vadd.f32 %v332, 0.0
        %v335 = vadd.f32 %v333, 0.0
        %v336 = vadd.f32 %v302, %v318
        %v337 = vadd.f32 %v303, %v319
        %v338 = vadd.f32 %v336, %v334
        %v339 = vadd.f32 %v337, %v335
        %v340 = vld [vmem:[%s213] sm:$0xff]
        %v341 = vld [vmem:[%s213 + $0x8] sm:$0xff]
        %343 = vset.pattern.permute.xlu0 0
        %344 = vperm.xlu0 %343, %v340
        %v345 = vpop.permute.xlu0 %344
        %348 = vset.pattern.permute.xlu0 0
        %349 = vperm.xlu0 %348, %v341
        %v350 = vpop.permute.xlu0 %349
        %v352 = vmul.f32 %v338, %v345
        %v353 = vmul.f32 %v339, %v350
        %v354 = vadd.f32 %v352, 0.0
        %v355 = vadd.f32 %v353, 0.0
        %356 = vrot.lane.b32.xlu0 %v338, 1
        %v357 = vpop.permute.xlu0 %356
        %358 = vrot.lane.b32.xlu0 %v339, 1
        %v359 = vpop.permute.xlu0 %358
        %360 = vset.pattern.permute.xlu0 1
        %361 = vperm.xlu0 %360, %v340
        %v362 = vpop.permute.xlu0 %361
        %364 = vset.pattern.permute.xlu0 1
        %365 = vperm.xlu0 %364, %v341
        %v366 = vpop.permute.xlu0 %365
        %v368 = vmul.f32 %v357, %v362
        %v369 = vmul.f32 %v359, %v366
        %v370 = vadd.f32 %v368, 0.0
        %v371 = vadd.f32 %v369, 0.0
        %372 = vrot.lane.b32.xlu0 %v338, 2
        %v373 = vpop.permute.xlu0 %372
        %374 = vrot.lane.b32.xlu0 %v339, 2
        %v375 = vpop.permute.xlu0 %374
        %376 = vset.pattern.permute.xlu0 2
        %377 = vperm.xlu0 %376, %v340
        %v378 = vpop.permute.xlu0 %377
        %380 = vset.pattern.permute.xlu0 2
        %381 = vperm.xlu0 %380, %v341
        %v382 = vpop.permute.xlu0 %381
        %v384 = vmul.f32 %v373, %v378
        %v385 = vmul.f32 %v375, %v382
        %v386 = vadd.f32 %v384, 0.0
        %v387 = vadd.f32 %v385, 0.0
        %388 = vrot.lane.b32.xlu0 %v338, 3
        %v389 = vpop.permute.xlu0 %388
        %390 = vrot.lane.b32.xlu0 %v339, 3
        %v391 = vpop.permute.xlu0 %390
        %392 = vset.pattern.permute.xlu0 3
        %393 = vperm.xlu0 %392, %v340
        %v394 = vpop.permute.xlu0 %393
        %396 = vset.pattern.permute.xlu0 3
        %397 = vperm.xlu0 %396, %v341
        %v398 = vpop.permute.xlu0 %397
        %v400 = vmul.f32 %v389, %v394
        %v401 = vmul.f32 %v391, %v398
        %v402 = vadd.f32 %v400, 0.0
        %v403 = vadd.f32 %v401, 0.0
        %404 = vrot.lane.b32.xlu0 %v338, 4
        %v405 = vpop.permute.xlu0 %404
        %406 = vrot.lane.b32.xlu0 %v339, 4
        %v407 = vpop.permute.xlu0 %406
        %408 = vset.pattern.permute.xlu0 4
        %409 = vperm.xlu0 %408, %v340
        %v410 = vpop.permute.xlu0 %409
        %412 = vset.pattern.permute.xlu0 4
        %413 = vperm.xlu0 %412, %v341
        %v414 = vpop.permute.xlu0 %413
        %v416 = vmul.f32 %v405, %v410
        %v417 = vmul.f32 %v407, %v414
        %v418 = vadd.f32 %v354, %v416
        %v419 = vadd.f32 %v355, %v417
        %v420 = vadd.f32 %v418, %v370
        %v421 = vadd.f32 %v419, %v371
        %v422 = vadd.f32 %v420, %v386
        %v423 = vadd.f32 %v421, %v387
        %v424 = vadd.f32 %v422, %v402
        %v425 = vadd.f32 %v423, %v403
        %426 = vst [vmem:[%s196] sm:$0xff] %v424
        %427 = vst [vmem:[%s196 + $0x8] sm:$0xff] %v425
        %s428 = sand.u32 %s103, 1
        %s429 = scalar_lea.sflag [#allocation3], %s428
        %s430 = sand.u32 %s103, 1
        %s431 = smul.addr %s430, 16
        %s432 = scalar_lea.vmem [#allocation2], %s431
        // Predicated region
        $region33: #{tpu_custom_call.1} parent=31 // pred_check
          %p433 = pneg %p113
        $region34: #{tpu_custom_call.1} parent=31 // pred_check_branch
          %435 = sbr.rel (%p433) target = $region36
        $region35: #{tpu_custom_call.1} parent=31 // pred_region
          %s436 = smul.u32 2, %s17
          %s438 = ssub.s32 256, 256
          %439 = vsyncadd %s429, %s438
          %s440 = smul.addr %s436, 128
          %s441 = scalar_lea.hbm %s3, %s440
          %s442 = sshll.u32 %s432, 4
          %s443 = int_to_ptr.vmem [resolvable:$true] %s442
          %448 = dma.vmem_to_hbm [thread:$0]  %s443, 256, %s441, %s429, 128, 128, 8
        $region36: #{tpu_custom_call.1} parent=31 // pred_fallthru
          _
      $region32: #{tpu_custom_call.1} parent=5 // pred_fallthru
        _
      %p449 = scmp.le.s32.totalorder 2, %s12
      // Predicated region
      $region37: #{tpu_custom_call.1} parent=5 // pred_check
        %p450 = pneg %p449
      $region38: #{tpu_custom_call.1} parent=5 // pred_check_branch
        %452 = sbr.rel (%p450) target = $region40
      $region39: #{tpu_custom_call.1} parent=5 // pred_region
        %s453 = ssub.s32 %s12, 2
        // Predicated region
        $region41: #{tpu_custom_call.1} parent=39 // pred_check
          %p454 = pneg %p119
        $region42: #{tpu_custom_call.1} parent=39 // pred_check_branch
          %456 = sbr.rel (%p454) target = $region44
        $region43: #{tpu_custom_call.1} parent=39 // pred_region
          %s457 = sand.u32 %s104, 1
          %s458 = scalar_lea.sflag [#allocation3], %s457
          %s459 = sand.u32 %s104, 1
          %s460 = smul.addr %s459, 16
          %s461 = scalar_lea.vmem [#allocation2], %s460
          %462 = dma.done %s458, 256
        $region44: #{tpu_custom_call.1} parent=39 // pred_fallthru
          _
      $region40: #{tpu_custom_call.1} parent=5 // pred_fallthru
        _
    $region6: #{tpu_custom_call.1} parent=1 // loop_footer
      %s16 = sadd.s32 1, %s12
    $region7: #{tpu_custom_call.1} parent=1 // loop_footer_branch
      %11 = sbr.rel target = $region3
    $region8: #{tpu_custom_call.1} parent=1 // loop_exit
      _
    %463 = vsyncpa [#allocation3], 1
    %s464 = scalar_lea.sflag [#allocation3], 1
    %465 = vsyncpa %s464, 1

</llo_original>
